<compile_context>
chip_gen: v7x
topology: tpu7x:2x2x1
jax: 0.10.0
libtpu: 0.0.40
codegen_flags: <defaults>
</compile_context>

<pallas_src>
import functools

import jax
import jax.numpy as jnp
from jax import lax
from jax.experimental import pallas as pl
from jax.experimental.pallas import tpu as pltpu

LANES = 128
MAX_BLOCK_ROWS = 4096  # (4096, 128) f32 block = 2 MiB per input per buffer


def _pos_int_pow(x, k: int):
    """x**k for integer k >= 1 via trace-time exponentiation by squaring."""
    result = None
    while k:
        if k & 1:
            result = x if result is None else result * x
        k >>= 1
        if k:
            x = x * x
    return result


def _modulating_factor(z, gamma):
    # exp(gamma * logsigmoid(z)) == sigmoid(z) ** gamma
    sig = 1.0 / (1.0 + jnp.exp(-z))
    g = float(gamma)
    if g == int(g):
        gi = int(g)
        if gi == 0:
            return jnp.ones_like(sig)
        return _pos_int_pow(sig, gi)
    # Non-integer gamma fallback (module types gamma as int, so rarely taken).
    return jnp.exp(jnp.float32(g) * jnp.log(sig))


def _focal_elements(x, t, gamma):
    """Per-element focal loss; numerically matches the PyTorch reference math."""
    x = x.astype(jnp.float32)
    t = t.astype(jnp.float32)
    u = x * t
    a = x - u                       # x - x*t
    z = a - u                       # -x * (2t - 1)
    max_val = jnp.maximum(-x, 0.0)
    # max(-x,0) + log(exp(-max) + exp(-x-max)) == max(-x,0) + log1p(exp(-|x|))
    bce = a + max_val + jnp.log1p(jnp.exp(-jnp.abs(x)))
    return _modulating_factor(z, gamma) * bce


def _focal_loss_kernel(x_ref, t_ref, out_ref, *, gamma, total_rows, block_rows,
                       blocks_per_core, needs_mask):
    p = pl.program_id(0)
    step = pl.program_id(1)

    @pl.when(step == 0)
    def _():
        out_ref[...] = jnp.zeros_like(out_ref)

    loss = _focal_elements(x_ref[...], t_ref[...], gamma)

    if needs_mask:
        # Mask rows past the valid range: the partial last block and the
        # clamped overshoot steps of the parallel axis read unspecified rows.
        # Row-count compare (not flat element index) so no int32 overflow.
        block_idx = p * blocks_per_core + step           # un-clamped block idx
        rows_left = total_rows - block_idx * block_rows  # scalar, may be <= 0
        row_ids = lax.broadcasted_iota(jnp.int32, (block_rows, LANES), 0)
        loss = jnp.where(row_ids < rows_left, loss, 0.0)

    # VPU-only partial sums into the resident (8,128) accumulator (vreg-wise
    # adds, no tile-boundary crossing); the single cross-lane/sublane
    # reduction happens once in the wrapper.
    out_ref[0] += jnp.sum(loss.reshape(block_rows // 8, 8, LANES), axis=0)


def focal_loss(output, target, gamma: int = 2):
    assert output.shape == target.shape
    n = output.size
    x_flat = output.reshape(-1)
    t_flat = target.reshape(-1)

    rows = n // LANES
    n_main = rows * LANES

    if rows < 8:
        # TODO(synk): tiny inputs (< 1024 elements) use the pure-JAX path; a
        # kernel launch is not worth it and sub-(8,128) tiles are awkward.
        return jnp.mean(_focal_elements(x_flat, t_flat, gamma))

    # Ragged tail (< 128 elements) in plain JAX so the main inputs are never
    # padded or copied; lane-aligned inputs take the zero-copy path below.
    tail_sum = jnp.float32(0.0)
    if n_main < n:
        tail_sum = jnp.sum(_focal_elements(x_flat[n_main:], t_flat[n_main:], gamma))

    x2d = (x_flat if n_main == n else x_flat[:n_main]).reshape(rows, LANES)
    t2d = (t_flat if n_main == n else t_flat[:n_main]).reshape(rows, LANES)

    block_rows = min(MAX_BLOCK_ROWS, (rows // 8) * 8)
    n_blocks = pl.cdiv(rows, block_rows)
    n_cores = 2 if n_blocks >= 2 else 1      # v7x has 2 TCs; harmless elsewhere
    blocks_per_core = pl.cdiv(n_blocks, n_cores)
    # Static: do we ever touch rows past `rows` (partial edge block or
    # clamped overshoot steps on the parallel axis)?
    needs_mask = (rows % block_rows != 0) or (blocks_per_core * n_cores != n_blocks)

    kernel = functools.partial(
        _focal_loss_kernel, gamma=gamma, total_rows=rows,
        block_rows=block_rows, blocks_per_core=blocks_per_core,
        needs_mask=needs_mask)

    def in_map(p, t, _bpc=blocks_per_core, _nb=n_blocks):
        # Clamp so overshoot steps never issue a fully out-of-range block DMA;
        # their contribution is zeroed by the in-kernel row mask.
        return (jnp.minimum(p * _bpc + t, _nb - 1), 0)

    partials = pl.pallas_call(
        kernel,
        out_shape=jax.ShapeDtypeStruct((n_cores, 8, LANES), jnp.float32),
        grid_spec=pltpu.PrefetchScalarGridSpec(
            num_scalar_prefetch=0,
            grid=(n_cores, blocks_per_core),
            in_specs=[
                pl.BlockSpec((block_rows, LANES), in_map),
                pl.BlockSpec((block_rows, LANES), in_map),
            ],
            out_specs=pl.BlockSpec((1, 8, LANES), lambda p, t: (p, 0, 0)),
        ),
        compiler_params=pltpu.CompilerParams(
            dimension_semantics=("parallel", "arbitrary"),
            vmem_limit_bytes=32 * 1024 * 1024,
        ),
    )(x2d, t2d)

    return (jnp.sum(partials) + tail_sum) / jnp.float32(n)


def focal_loss_ref(output, target, gamma: int = 2):
    """Pure-JAX transcription of the original PyTorch FocalLoss.forward."""
    x = output.astype(jnp.float32)
    t = target.astype(jnp.float32)
    max_val = jnp.maximum(-x, 0.0)
    loss = x - x * t + max_val + jnp.log(jnp.exp(-max_val) + jnp.exp(-x - max_val))
    invprobs = jax.nn.log_sigmoid(-x * (t * 2.0 - 1.0))
    loss = jnp.exp(invprobs * gamma) * loss
    return jnp.mean(loss)


if __name__ == "__main__":
    key = jax.random.PRNGKey(0)
    k1, k2 = jax.random.split(key)

    # Primary shape: NCHW logits + binary (multi-label) targets.
    # Lane/block-aligned -> exercises the no-mask fast path.
    x = jax.random.normal(k1, (2, 4, 16, 16), dtype=jnp.float32)
    tgt = (jax.random.uniform(k2, (2, 4, 16, 16)) > 0.5).astype(jnp.float32)

    loss = focal_loss(x, tgt, gamma=2)
    jax.block_until_ready(loss)
    ref = focal_loss_ref(x, tgt, gamma=2)
    assert jnp.allclose(loss, ref, rtol=1e-5, atol=1e-5), (loss, ref)

    # Extra shapes: 2-core parallel split + partial/overshoot last block
    # (17 full rows), and the ragged (<128 element) tail path; plus a bf16
    # input to check in-kernel upcast.
    for shape in [(2, 4, 16, 17), (2, 4, 10, 25)]:
        kx, kt = jax.random.split(jax.random.fold_in(key, shape[-1]))
        x2 = jax.random.normal(kx, shape, dtype=jnp.float32)
        t2 = (jax.random.uniform(kt, shape) > 0.5).astype(jnp.float32)
        got = focal_loss(x2, t2, gamma=2)
        jax.block_until_ready(got)
        want = focal_loss_ref(x2, t2, gamma=2)
        assert jnp.allclose(got, want, rtol=1e-5, atol=1e-5), (shape, got, want)

    kx, kt = jax.random.split(jax.random.fold_in(key, 999))
    xb = jax.random.normal(kx, (2, 4, 16, 16), dtype=jnp.bfloat16)
    tb = (jax.random.uniform(kt, (2, 4, 16, 16)) > 0.5).astype(jnp.bfloat16)
    got = focal_loss(xb, tb, gamma=2)
    jax.block_until_ready(got)
    want = focal_loss_ref(xb, tb, gamma=2)
    assert jnp.allclose(got, want, rtol=1e-2, atol=1e-2), (got, want)

    print("KERNEL_OK")
</pallas_src>

<mosaic_0001>
module attributes {stable_mosaic.version = 11 : i64} {
  func.func @_focal_loss_kernel(%arg0: i32, %arg1: i32, %arg2: memref<16x128xf32, #tpu.memory_space<vmem>>, %arg3: memref<16x128xf32, #tpu.memory_space<vmem>>, %arg4: memref<1x8x128xf32, #tpu.memory_space<vmem>>) attributes {dimension_semantics = [#tpu.dimension_semantics<parallel>, #tpu.dimension_semantics<arbitrary>], iteration_bounds = array<i64: 1, 1>, scalar_prefetch = 0 : i64, scratch_operands = 0 : i64, tpu.core_type = #tpu.core_type<tc>, window_params = [{transform_indices = @transform_0, window_bounds = array<i64: 16, 128>}, {transform_indices = @transform_1, window_bounds = array<i64: 16, 128>}, {transform_indices = @transform_2, window_bounds = array<i64: 1, 8, 128>}]} {
    %c0_i32 = arith.constant 0 : i32
    %0 = arith.cmpi eq, %arg1, %c0_i32 : i32
    %1 = arith.extui %0 : i1 to i32
    %c0_i32_0 = arith.constant 0 : i32
    %2 = arith.cmpi ne, %1, %c0_i32_0 : i32
    scf.if %2 {
      %cst_16 = arith.constant 0.000000e+00 : f32
      %36 = vector.broadcast %cst_16 : f32 to vector<1x8x128xf32>
      %c0_17 = arith.constant 0 : index
      %c0_18 = arith.constant 0 : index
      %c0_19 = arith.constant 0 : index
      %37 = vector.load %arg4[%c0_17, %c0_18, %c0_19] : memref<1x8x128xf32, #tpu.memory_space<vmem>>, vector<1x8x128xf32>
      tpu.vector_store %arg4[%c0_17, %c0_18, %c0_19], %36 {strides = array<i32>} : memref<1x8x128xf32, #tpu.memory_space<vmem>>, vector<1x8x128xf32>,
    } else {
    }
    %c0 = arith.constant 0 : index
    %c0_1 = arith.constant 0 : index
    %3 = vector.load %arg2[%c0, %c0_1] : memref<16x128xf32, #tpu.memory_space<vmem>>, vector<16x128xf32>
    %c0_2 = arith.constant 0 : index
    %c0_3 = arith.constant 0 : index
    %4 = vector.load %arg3[%c0_2, %c0_3] : memref<16x128xf32, #tpu.memory_space<vmem>>, vector<16x128xf32>
    %5 = arith.mulf %3, %4 : vector<16x128xf32>
    %6 = arith.subf %3, %5 : vector<16x128xf32>
    %7 = arith.subf %6, %5 : vector<16x128xf32>
    %cst = arith.constant 0.000000e+00 : f32
    %8 = vector.broadcast %cst : f32 to vector<16x128xf32>
    %9 = arith.subf %8, %3 : vector<16x128xf32>
    %cst_4 = arith.constant 0.000000e+00 : f32
    %10 = vector.broadcast %cst_4 : f32 to vector<16x128xf32>
    %11 = arith.maximumf %9, %10 : vector<16x128xf32>
    %12 = arith.addf %6, %11 : vector<16x128xf32>
    %13 = math.absf %3 : vector<16x128xf32>
    %cst_5 = arith.constant 0.000000e+00 : f32
    %14 = vector.broadcast %cst_5 : f32 to vector<16x128xf32>
    %15 = arith.subf %14, %13 : vector<16x128xf32>
    %16 = math.exp %15 : vector<16x128xf32>
    %17 = math.log1p %16 : vector<16x128xf32>
    %18 = arith.addf %12, %17 : vector<16x128xf32>
    %cst_6 = arith.constant 0.000000e+00 : f32
    %19 = vector.broadcast %cst_6 : f32 to vector<16x128xf32>
    %20 = arith.subf %19, %7 : vector<16x128xf32>
    %21 = math.exp %20 : vector<16x128xf32>
    %cst_7 = arith.constant 1.000000e+00 : f32
    %22 = vector.broadcast %cst_7 : f32 to vector<16x128xf32>
    %23 = arith.addf %22, %21 : vector<16x128xf32>
    %cst_8 = arith.constant 1.000000e+00 : f32
    %24 = vector.broadcast %cst_8 : f32 to vector<16x128xf32>
    %25 = arith.divf %24, %23 : vector<16x128xf32>
    %26 = arith.mulf %25, %25 : vector<16x128xf32>
    %27 = arith.mulf %26, %18 : vector<16x128xf32>
    %c0_9 = arith.constant 0 : index
    %c0_10 = arith.constant 0 : index
    %c0_11 = arith.constant 0 : index
    %28 = vector.load %arg4[%c0_9, %c0_10, %c0_11] : memref<1x8x128xf32, #tpu.memory_space<vmem>>, vector<1x8x128xf32>
    %29 = vector.shape_cast %28 : vector<1x8x128xf32> to vector<8x128xf32>
    %30 = vector.shape_cast %27 : vector<16x128xf32> to vector<2x8x128xf32>
    %cst_12 = arith.constant dense<0.000000e+00> : vector<8x128xf32>
    %31 = vector.multi_reduction <add>, %30, %cst_12 [0] : vector<2x8x128xf32> to vector<8x128xf32>
    %32 = arith.addf %29, %31 : vector<8x128xf32>
    %c0_13 = arith.constant 0 : index
    %c0_14 = arith.constant 0 : index
    %c0_15 = arith.constant 0 : index
    %33 = vector.load %arg4[%c0_13, %c0_14, %c0_15] : memref<1x8x128xf32, #tpu.memory_space<vmem>>, vector<1x8x128xf32>
    %34 = vector.shape_cast %33 : vector<1x8x128xf32> to vector<8x128xf32>
    %35 = vector.shape_cast %32 : vector<8x128xf32> to vector<1x8x128xf32>
    tpu.vector_store %arg4[%c0_13, %c0_14, %c0_15], %35 {strides = array<i32>} : memref<1x8x128xf32, #tpu.memory_space<vmem>>, vector<1x8x128xf32>,
    return
  }
  func.func @transform_0(%arg0: i32, %arg1: i32) -> (i32, i32) {
    %c1_i32 = arith.constant 1 : i32
    %0 = arith.muli %arg0, %c1_i32 : i32
    %1 = arith.addi %0, %arg1 : i32
    %c0_i32 = arith.constant 0 : i32
    %2 = arith.minsi %1, %c0_i32 : i32
    %c0_i32_0 = arith.constant 0 : i32
    %c0_i32_1 = arith.constant 0 : i32
    return %2, %c0_i32_0 : i32, i32
  }
  func.func @transform_1(%arg0: i32, %arg1: i32) -> (i32, i32) {
    %c1_i32 = arith.constant 1 : i32
    %0 = arith.muli %arg0, %c1_i32 : i32
    %1 = arith.addi %0, %arg1 : i32
    %c0_i32 = arith.constant 0 : i32
    %2 = arith.minsi %1, %c0_i32 : i32
    %c0_i32_0 = arith.constant 0 : i32
    %c0_i32_1 = arith.constant 0 : i32
    return %2, %c0_i32_0 : i32, i32
  }
  func.func @transform_2(%arg0: i32, %arg1: i32) -> (i32, i32, i32) {
    %c0_i32 = arith.constant 0 : i32
    %c0_i32_0 = arith.constant 0 : i32
    %c0_i32_1 = arith.constant 0 : i32
    return %arg0, %c0_i32, %c0_i32_0 : i32, i32, i32
  }
}

</mosaic_0001>

<llo_original>
// kernel: tpu_custom_call.1
$region0: #{tpu_custom_call.1}
  #allocation0 [shape = 'u32[]', space=smem, size = 0x4, offset = 0x4, fixed_abs, tag = 'smem constant byte address 0x4 - core index']
  #allocation1 [shape = 'u32[144,128]{1,0:T(1,128)}', space=vmem, size = 0x12000, scoped, tag = 'internal scratch']
  %s0 = inlined_call_operand.hbm [shape: f32[16,128], index: 0, kind: input, shape index: {}]
  %s1 = inlined_call_operand.hbm [shape: f32[16,128], index: 1, kind: input, shape index: {}]
  %s2 = inlined_call_operand.hbm [shape: f32[1,8,128], index: 2, kind: output, shape index: {}]
  %s3 = sld [smem:[#allocation0]]
  $region30: #{tpu_custom_call.1} parent=0
    _
  %s5 = ssub.s32 1, %s3
  %s6 = scalar_select 0, %s5, %s3
  $region1: #{tpu_custom_call.1} parent=0
    #allocation2 [shape = 'u8[8192]{0}', space=vmem, size = 0x2000, scoped, tag = 'input window, operand 0, single buffered']
    #allocation3 [shape = 's32[1]{0}', space=sflag, size = 0x4, scoped, tag = 'scoped memory for tpu_custom_call.1']
    #allocation4 [shape = 's32[1]{0}', space=sflag, size = 0x4, scoped, tag = 'scoped memory for tpu_custom_call.1']
    #allocation5 [shape = 'u8[8192]{0}', space=vmem, size = 0x2000, scoped, tag = 'input window, operand 1, single buffered']
    #allocation6 [shape = 's32[1]{0}', space=sflag, size = 0x4, scoped, tag = 'scoped memory for tpu_custom_call.1']
    #allocation7 [shape = 'u8[4096]{0}', space=vmem, size = 0x1000, scoped, tag = 'output window, operand 0, single buffered']
    %7 = vsyncpa [#allocation3], 0
    %8 = vsyncpa [#allocation6], 0
    %9 = vsyncpa [#allocation4], 0
    // Predicated region
    $region2: #{tpu_custom_call.1} parent=1 // pred_check
      _
    $region3: #{tpu_custom_call.1} parent=1 // pred_check_branch
      %11 = sbr.rel (0) target = $region5
    $region4: #{tpu_custom_call.1} parent=1 // pred_region
      %s12 = sadd.s32 0, 0
      %p13 = scmp.lt.s32.totalorder %s12, 0
      %s14 = scalar_select %p13, %s12, 0
      %s15 = smul.u32 2, %s14
      %s17 = ssub.s32 256, 256
      %18 = vsyncadd [#allocation3], %s17
      %s19 = smul.addr %s15, 128
      %s20 = scalar_lea.hbm %s0, %s19
      %s21 = sshll.u32 [#allocation2], 4
      %s22 = int_to_ptr.vmem [resolvable:$true] %s21
      %27 = dma.hbm_to_vmem [thread:$0]  %s20, 256, %s22, [#allocation3], 128, 128, 8
    $region5: #{tpu_custom_call.1} parent=1 // pred_fallthru
      _
    // Predicated region
    $region6: #{tpu_custom_call.1} parent=1 // pred_check
      _
    $region7: #{tpu_custom_call.1} parent=1 // pred_check_branch
      %29 = sbr.rel (0) target = $region9
    $region8: #{tpu_custom_call.1} parent=1 // pred_region
      %s30 = sadd.s32 0, 0
      %p31 = scmp.lt.s32.totalorder %s30, 0
      %s32 = scalar_select %p31, %s30, 0
      %s33 = smul.u32 2, %s32
      %s35 = ssub.s32 256, 256
      %36 = vsyncadd [#allocation6], %s35
      %s37 = smul.addr %s33, 128
      %s38 = scalar_lea.hbm %s1, %s37
      %s39 = sshll.u32 [#allocation5], 4
      %s40 = int_to_ptr.vmem [resolvable:$true] %s39
      %45 = dma.hbm_to_vmem [thread:$0]  %s38, 256, %s40, [#allocation6], 128, 128, 8
    $region9: #{tpu_custom_call.1} parent=1 // pred_fallthru
      _
    // Predicated region
    $region10: #{tpu_custom_call.1} parent=1 // pred_check
      _
    $region11: #{tpu_custom_call.1} parent=1 // pred_check_branch
      %47 = sbr.rel (0) target = $region13
    $region12: #{tpu_custom_call.1} parent=1 // pred_region
      %48 = dma.done [#allocation3], 256
    $region13: #{tpu_custom_call.1} parent=1 // pred_fallthru
      _
    // Predicated region
    $region14: #{tpu_custom_call.1} parent=1 // pred_check
      _
    $region15: #{tpu_custom_call.1} parent=1 // pred_check_branch
      %50 = sbr.rel (0) target = $region17
    $region16: #{tpu_custom_call.1} parent=1 // pred_region
      %51 = dma.done [#allocation6], 256
    $region17: #{tpu_custom_call.1} parent=1 // pred_fallthru
      _
    %s52 = sadd.s32 0, 0
    %p53 = scmp.lt.s32.totalorder %s52, 0
    %s54 = scalar_select %p53, %s52, 0
    %s55 = smul.u32 2, %s54
    %s56 = sadd.s32 0, 0
    %p57 = scmp.lt.s32.totalorder %s56, 0
    %s58 = scalar_select %p57, %s56, 0
    %s59 = smul.u32 2, %s58
    %p60 = scmp.eq.s32.totalorder 0, 0
    // Predicated region
    $region18: #{tpu_custom_call.1} parent=1 // pred_check
      %p61 = pneg %p60
    $region19: #{tpu_custom_call.1} parent=1 // pred_check_branch
      %63 = sbr.rel (%p61) target = $region21
    $region20: #{tpu_custom_call.1} parent=1 // pred_region
      %64 = vst [vmem:[#allocation7] sm:$0xff] 0.0
    $region21: #{tpu_custom_call.1} parent=1 // pred_fallthru
      _
    %v65 = vld [vmem:[#allocation2] sm:$0xff]
    %v66 = vld [vmem:[#allocation2 + $0x8] sm:$0xff]
    %v67 = vld [vmem:[#allocation5] sm:$0xff]
    %v68 = vld [vmem:[#allocation5 + $0x8] sm:$0xff]
    %v69 = vmul.f32 %v65, %v67
    %v70 = vmul.f32 %v66, %v68
    %v71 = vsub.f32 %v65, %v69
    %v72 = vsub.f32 %v66, %v70
    %v73 = vsub.f32 %v71, %v69
    %v74 = vsub.f32 %v72, %v70
    %v75 = vsub.f32 0.0, %v65
    %v76 = vsub.f32 0.0, %v66
    %v77 = vmax.f32 %v75, 0.0
    %v78 = vmax.f32 %v76, 0.0
    %v79 = vadd.f32 %v71, %v77
    %v80 = vadd.f32 %v72, %v78
    %v81 = vand.u32 2147483647, %v65
    %v82 = vand.u32 2147483647, %v66
    %v83 = vsub.f32 0.0, %v81
    %v84 = vsub.f32 0.0, %v82
    %v85 = vmul.f32 %v83, 1.442695
    %v86 = vpow.pop %v85
    %v87 = vmul.f32 %v84, 1.442695
    %v88 = vpow.pop %v87
    %v89 = vadd.f32 %v86, 1.0
    %v90 = vlog2.pop %v89
    %v91 = vmul.f32 %v90, 0.6931472
    %v92 = vmul.f32 -0.5, %v86
    %v93 = vadd.f32 %v92, 1.0
    %v94 = vmul.f32 %v93, %v86
    %v95 = vand.u32 2147483647, %v86
    %vm96 = vcmp.lt.f32.partialorder %v95, 0.0004427343
    %v97 = vsel %vm96, %v94, %v91
    %v98 = vadd.f32 %v88, 1.0
    %v99 = vlog2.pop %v98
    %v100 = vmul.f32 %v99, 0.6931472
    %v101 = vmul.f32 -0.5, %v88
    %v102 = vadd.f32 %v101, 1.0
    %v103 = vmul.f32 %v102, %v88
    %v104 = vand.u32 2147483647, %v88
    %vm105 = vcmp.lt.f32.partialorder %v104, 0.0004427343
    %v106 = vsel %vm105, %v103, %v100
    %v107 = vadd.f32 %v79, %v97
    %v108 = vadd.f32 %v80, %v106
    %v109 = vsub.f32 0.0, %v73
    %v110 = vsub.f32 0.0, %v74
    %v111 = vmul.f32 %v109, 1.442695
    %v112 = vpow.pop %v111
    %v113 = vmul.f32 %v110, 1.442695
    %v114 = vpow.pop %v113
    %v115 = vadd.f32 %v112, 1.0
    %v116 = vadd.f32 %v114, 1.0
    %v117 = vrcp.pop %v115
    %v118 = vmul.f32 1.0, %v117
    %v119 = vrcp.pop %v116
    %v120 = vmul.f32 1.0, %v119
    %v121 = vmul.f32 %v118, %v118
    %v122 = vmul.f32 %v120, %v120
    %v123 = vmul.f32 %v121, %v107
    %v124 = vmul.f32 %v122, %v108
    %v125 = vld [vmem:[#allocation7] sm:$0xff]
    %v126 = vadd.f32 %v123, %v124
    %v127 = vadd.f32 %v125, %v126
    %128 = vst [vmem:[#allocation7] sm:$0xff] %v127
    // Predicated region
    $region22: #{tpu_custom_call.1} parent=1 // pred_check
      _
    $region23: #{tpu_custom_call.1} parent=1 // pred_check_branch
      %130 = sbr.rel (0) target = $region25
    $region24: #{tpu_custom_call.1} parent=1 // pred_region
      %s132 = ssub.s32 128, 128
      %133 = vsyncadd [#allocation4], %s132
      %s135 = sshll.u32 [#allocation7], 4
      %s136 = int_to_ptr.vmem [resolvable:$true] %s135
      %138 = dma.vmem_to_hbm [thread:$0]  %s136, 128, %s2, [#allocation4]
    $region25: #{tpu_custom_call.1} parent=1 // pred_fallthru
      _
    // Predicated region
    $region26: #{tpu_custom_call.1} parent=1 // pred_check
      _
    $region27: #{tpu_custom_call.1} parent=1 // pred_check_branch
      %140 = sbr.rel (0) target = $region29
    $region28: #{tpu_custom_call.1} parent=1 // pred_region
      %141 = dma.done [#allocation4], 128
    $region29: #{tpu_custom_call.1} parent=1 // pred_fallthru
      _
    %142 = vsyncpa [#allocation3], 1
    %143 = vsyncpa [#allocation6], 1
    %144 = vsyncpa [#allocation4], 1

</llo_original>
